<compile_context>
chip_gen: v6e
topology: v6e:2x2x1
jax: 0.10.0
libtpu: 0.0.40
codegen_flags: <defaults>
</compile_context>

<pallas_src>
import functools

import jax
import jax.numpy as jnp
import numpy as np
from jax.experimental import pallas as pl
from jax.experimental.pallas import tpu as pltpu

PAD_IDX = 0          # self.word2vec.key_to_index['pad']
W_WORDS = 0.0        # words-space loss weight (skipped, see TODO above)
W_EMB = 0.5          # embedding-space loss weight
W_LOGITS = 0.25      # logits-space loss weight
SUMMED_WEIGHTS = W_WORDS + W_EMB + W_LOGITS


def _round_up(x, m):
    return -(-x // m) * m


def _tpu_vmem_capacity_bytes():
    try:
        return int(pltpu.get_tpu_info().vmem_capacity_bytes)
    except Exception:
        return 64 << 20          # conservative: v7x per-TensorCore VMEM


def _num_tensorcores():
    # 2-way split is only worthwhile (and only guaranteed to shard) on v7x.
    try:
        kind = jax.devices()[0].device_kind.lower()
    except Exception:
        return 1
    return 2 if ("v7" in kind or "7x" in kind) else 1


def _combined_loss_kernel(logits_ref, target_ref, emb_hbm_ref, out_ref,
                          emb_vmem, acc_ref, copy_sem,
                          *, nj_per, tm, n_tok, pad_idx):
    """Grid (i, j): i = core split (CORE_PARALLEL on v7x, size 1 elsewhere),
    j = token tile (arbitrary / reduction).

    emb_vmem : single-buffered bf16 copy of the embedding table (filled once
               per core at j == 0; scratch persists across the j loop).
    acc_ref  : (TM, 128) f32 lane-slotted accumulator
               lane 0: ce_sum, lane 1: emb_sq_sum, lane 2: logits_loss_sum.
    out_ref  : (1, 1, 128) f32 per-core partials, written once at j == nj-1.
    """
    i = pl.program_id(0)
    j = pl.program_id(1)

    @pl.when(j == 0)
    def _init():
        # Single-buffered resident embedding table: one DMA per core.
        cp = pltpu.make_async_copy(emb_hbm_ref, emb_vmem, copy_sem)
        cp.start()
        cp.wait()
        acc_ref[...] = jnp.zeros_like(acc_ref)

    raw = logits_ref[...]                               # (TM, V) input dtype
    tgt_raw = target_ref[...]                           # (TM, 1) int32
    vocab = raw.shape[-1]

    # Global row ids -> validity mask (boundary / duplicated tiles contribute 0).
    row_start = (i * nj_per + j) * tm
    row_ids = row_start + jax.lax.broadcasted_iota(jnp.int32, (tm, 1), 0)
    valid_b = row_ids < n_tok
    valid = valid_b.astype(jnp.float32)

    # Sanitize potential undefined tail data BEFORE any transcendental
    # (0-filled rows give finite results, then get masked to zero).
    logits = jnp.where(valid_b, raw.astype(jnp.float32), 0.0)   # (TM, V) f32
    tgt = jnp.where(valid_b, tgt_raw, pad_idx)                   # (TM, 1)

    iota_v = jax.lax.broadcasted_iota(jnp.int32, (tm, vocab), 1)
    tgt_hit = iota_v == tgt                                      # (TM, V) bool

    # --- softmax statistics (shared by CE and the logits loss) ---
    m = jnp.max(logits, axis=-1, keepdims=True)                  # (TM, 1)
    shifted = logits - m
    exps = jnp.exp(shifted)
    sumexp = jnp.sum(exps, axis=-1, keepdims=True)
    log_z = jnp.log(sumexp)
    inv_sumexp = pl.reciprocal(sumexp, approx=True)              # EUP slot

    tgt_logit = jnp.sum(jnp.where(tgt_hit, shifted, 0.0), axis=-1, keepdims=True)
    exp_tgt = jnp.exp(tgt_logit)            # == exp(shifted[tgt]); no (TM,V) reduce

    ce_col = (log_z - tgt_logit) * valid                         # (TM, 1)
    logit_col = (1.0 - exp_tgt * inv_sumexp) * valid             # (TM, 1)

    # --- argmax over vocab (first maximal index, like torch.argmax) ---
    is_max = logits == m
    pred_idx = jnp.min(jnp.where(is_max, iota_v, vocab), axis=-1, keepdims=True)
    pred_hit = iota_v == pred_idx

    not_pad = jnp.logical_and(tgt != pad_idx, valid_b)           # (TM, 1) bool

    # --- fused bf16 one-hot-diff matmul: (E[pred] - E[tgt]) in one MXU pass ---
    diff_onehot = ((pred_hit.astype(jnp.bfloat16) - tgt_hit.astype(jnp.bfloat16))
                   * not_pad.astype(jnp.bfloat16))               # exact in bf16
    diff_emb = jnp.dot(diff_onehot, emb_vmem[...],
                       preferred_element_type=jnp.float32)        # (TM, D) f32
    sq_col = jnp.sum(diff_emb * diff_emb, axis=-1, keepdims=True)  # (TM, 1)

    # --- lane-slotted accumulation (pure VPU; no per-step XLU/scalar work) ---
    lane_ids = jax.lax.broadcasted_iota(jnp.int32, (tm, 128), 1)
    contrib = jnp.where(lane_ids == 0, ce_col,
                        jnp.where(lane_ids == 1, sq_col,
                                  jnp.where(lane_ids == 2, logit_col, 0.0)))
    acc_ref[...] += contrib

    @pl.when(j == nj_per - 1)
    def _finalize():
        out_ref[...] = jnp.sum(acc_ref[...], axis=0,
                               keepdims=True).reshape(1, 1, 128)


def combined_lyrics_loss(logits, target, embedding_table, tm=None):
    """logits: (B, S, V) (any float dtype), target: (B, S) int,
    embedding_table: (V, D) float."""
    batch, seq, vocab = logits.shape
    emb_v, emb_d = embedding_table.shape
    n_tok = batch * seq

    vmem_cap = _tpu_vmem_capacity_bytes()
    n_cores = _num_tensorcores()

    emb_bytes = emb_v * emb_d * 2                       # bf16, single-buffered
    logits_isz = jnp.dtype(logits.dtype).itemsize

    def _tile_footprint(t):
        return (2 * t * vocab * logits_isz              # double-buffered logits tiles
                + 8 * t * vocab * 4                     # live f32 (TM,V) temporaries
                + t * 128 * 4)                          # lane-slot accumulator

    if tm is None:
        tm = 256
        budget = vmem_cap // 2                          # leave pipeline headroom
        while tm > 8 and _tile_footprint(tm) + emb_bytes + (1 << 20) > budget:
            tm //= 2
        tm = max(8, min(tm, _round_up(n_tok, 8)))       # don't overshoot tiny inputs
    tm = _round_up(tm, 8)

    nj_total = -(-n_tok // tm)                          # real token tiles
    nj_per = -(-nj_total // n_cores)                    # tiles per core

    need = _tile_footprint(tm) + emb_bytes + (2 << 20)
    vmem_limit = int(min(max(need, 32 << 20), int(0.85 * vmem_cap)))
    vmem_limit = max(vmem_limit, need)                  # never starve the estimate

    if n_cores == 2:
        dim_sem = (pltpu.CORE_PARALLEL, pltpu.ARBITRARY)
    else:
        dim_sem = ("arbitrary", "arbitrary")

    kernel = functools.partial(_combined_loss_kernel, nj_per=nj_per, tm=tm,
                               n_tok=n_tok, pad_idx=PAD_IDX)

    def tile_map(i, j):
        # Clamp so a core's tail tiles never map to fully out-of-range blocks;
        # duplicated reads are row-id masked to zero inside the kernel.
        return (jnp.minimum(i * nj_per + j, nj_total - 1), 0)

    grid_spec = pltpu.PrefetchScalarGridSpec(
        num_scalar_prefetch=0,
        grid=(n_cores, nj_per),
        in_specs=[
            pl.BlockSpec((tm, vocab), tile_map),        # logits (original dtype)
            pl.BlockSpec((tm, 1), tile_map),            # targets
            pl.BlockSpec(memory_space=pl.ANY),          # embedding table (HBM)
        ],
        out_specs=pl.BlockSpec((1, 1, 128), lambda i, j: (i, 0, 0)),
        scratch_shapes=[
            pltpu.VMEM((emb_v, emb_d), jnp.bfloat16),   # single-buffered table
            pltpu.VMEM((tm, 128), jnp.float32),         # lane-slot accumulator
            pltpu.SemaphoreType.DMA(()),                # table copy semaphore
        ],
    )

    loss_call = pl.pallas_call(
        kernel,
        out_shape=jax.ShapeDtypeStruct((n_cores, 1, 128), jnp.float32),
        grid_spec=grid_spec,
        compiler_params=pltpu.CompilerParams(
            dimension_semantics=dim_sem,
            vmem_limit_bytes=vmem_limit),
    )

    @jax.jit
    def run(logits_in, target_in, emb_in):
        logits2d = logits_in.reshape(n_tok, vocab)       # keep HBM dtype, no pad
        target2d = target_in.reshape(n_tok, 1).astype(jnp.int32)
        emb_bf16 = emb_in.astype(jnp.bfloat16)

        partials = loss_call(logits2d, target2d, emb_bf16)
        totals = jnp.sum(partials[:, 0, :], axis=0)      # (128,) lane-slotted sums

        # #non-pad tokens computed on the tiny target array (cheap XLA op).
        mask_cnt = jnp.sum(target2d != PAD_IDX).astype(jnp.float32)

        ce_loss = totals[0] / n_tok                      # nn.CrossEntropyLoss(mean)
        emb_loss = totals[1] / jnp.maximum(mask_cnt, 1.0)
        logits_loss = totals[2] / n_tok
        weighted = ce_loss + W_EMB * emb_loss + W_LOGITS * logits_loss
        return weighted / (SUMMED_WEIGHTS + 1.0)

    return run(logits, target, embedding_table)


def _reference_loss(logits, target, embedding_table):
    """Pure-JAX reference of the same forward semantics."""
    batch, seq, vocab = logits.shape
    n_tok = batch * seq
    lg = logits.reshape(n_tok, vocab).astype(jnp.float32)
    tg = target.reshape(n_tok)
    log_z = jax.scipy.special.logsumexp(lg, axis=-1)
    tgt_logit = jnp.take_along_axis(lg, tg[:, None], axis=-1)[:, 0]
    ce = jnp.mean(log_z - tgt_logit)
    pred = jnp.argmax(lg, axis=-1)
    pe = embedding_table[pred]
    te = embedding_table[tg]
    mask = (tg != PAD_IDX).astype(jnp.float32)
    emb_loss = jnp.sum(jnp.sum((pe - te) ** 2, -1) * mask) / jnp.maximum(jnp.sum(mask), 1.0)
    logits_loss = jnp.mean(1.0 - jnp.exp(tgt_logit - log_z))
    weighted = ce + W_EMB * emb_loss + W_LOGITS * logits_loss
    return weighted / (SUMMED_WEIGHTS + 1.0)


if __name__ == "__main__":
    B, S, V, D = 2, 8, 256, 128
    key = jax.random.PRNGKey(0)
    k_logits, k_tgt, k_emb = jax.random.split(key, 3)

    logits = jax.random.normal(k_logits, (B, S, V), dtype=jnp.float32)
    target = jax.random.randint(k_tgt, (B, S), 0, V, dtype=jnp.int32)
    embedding_table = 0.02 * jax.random.normal(k_emb, (V, D), dtype=jnp.float32)

    out = jax.block_until_ready(combined_lyrics_loss(logits, target, embedding_table))
    ref = jax.block_until_ready(_reference_loss(logits, target, embedding_table))

    # bf16 embedding table + approx reciprocal -> small, bounded deviation.
    np.testing.assert_allclose(np.asarray(out), np.asarray(ref), rtol=2e-3, atol=2e-3)

    print("KERNEL_OK")
</pallas_src>

<mosaic_0001>
module attributes {stable_mosaic.version = 11 : i64} {
  func.func @_combined_loss_kernel(%arg0: i32, %arg1: i32, %arg2: memref<16x256xf32, #tpu.memory_space<vmem>>, %arg3: memref<16x1xi32, #tpu.memory_space<vmem>>, %arg4: memref<256x128xbf16, #tpu.memory_space<any>>, %arg5: memref<1x1x128xf32, #tpu.memory_space<vmem>>, %arg6: memref<256x128xbf16, #tpu.memory_space<vmem>>, %arg7: memref<16x128xf32, #tpu.memory_space<vmem>>, %arg8: memref<!tpu.dma_semaphore, #tpu.memory_space<semaphore_mem>>) attributes {dimension_semantics = [#tpu.dimension_semantics<arbitrary>, #tpu.dimension_semantics<arbitrary>], iteration_bounds = array<i64: 1, 1>, scalar_prefetch = 0 : i64, scratch_operands = 3 : i64, tpu.core_type = #tpu.core_type<tc>, window_params = [{transform_indices = @transform_0, window_bounds = array<i64: 16, 256>}, {transform_indices = @transform_1, window_bounds = array<i64: 16, 1>}, {}, {transform_indices = @transform_3, window_bounds = array<i64: 1, 1, 128>}]} {
    %c0_i32 = arith.constant 0 : i32
    %0 = arith.cmpi eq, %arg1, %c0_i32 : i32
    %1 = arith.extui %0 : i1 to i32
    %c0_i32_0 = arith.constant 0 : i32
    %2 = arith.cmpi ne, %1, %c0_i32_0 : i32
    scf.if %2 {
      tpu.enqueue_dma source(%arg4 : memref<256x128xbf16, #tpu.memory_space<any>>) target(%arg6 : memref<256x128xbf16, #tpu.memory_space<vmem>>) target_semaphore(%arg8 : memref<!tpu.dma_semaphore, #tpu.memory_space<semaphore_mem>>)
      tpu.wait_dma2 semaphore(%arg8 : memref<!tpu.dma_semaphore, #tpu.memory_space<semaphore_mem>>) src(%arg4 : memref<256x128xbf16, #tpu.memory_space<any>>) dst(%arg6 : memref<256x128xbf16, #tpu.memory_space<vmem>>)
      %cst_26 = arith.constant 0.000000e+00 : f32
      %95 = vector.broadcast %cst_26 : f32 to vector<16x128xf32>
      %c0_27 = arith.constant 0 : index
      %c0_28 = arith.constant 0 : index
      %96 = vector.load %arg7[%c0_27, %c0_28] : memref<16x128xf32, #tpu.memory_space<vmem>>, vector<16x128xf32>
      tpu.vector_store %arg7[%c0_27, %c0_28], %95 {strides = array<i32>} : memref<16x128xf32, #tpu.memory_space<vmem>>, vector<16x128xf32>,
    } else {
    }
    %c0 = arith.constant 0 : index
    %c0_1 = arith.constant 0 : index
    %3 = vector.load %arg2[%c0, %c0_1] : memref<16x256xf32, #tpu.memory_space<vmem>>, vector<16x256xf32>
    %c0_2 = arith.constant 0 : index
    %c0_3 = arith.constant 0 : index
    %4 = vector.load %arg3[%c0_2, %c0_3] : memref<16x1xi32, #tpu.memory_space<vmem>>, vector<16x1xi32>
    %c1_i32 = arith.constant 1 : i32
    %5 = arith.muli %arg0, %c1_i32 : i32
    %6 = arith.addi %5, %arg1 : i32
    %c16_i32 = arith.constant 16 : i32
    %7 = arith.muli %6, %c16_i32 : i32
    %8 = tpu.iota {dimensions = array<i32: 0>} : vector<16x1xi32>
    %9 = vector.broadcast %7 : i32 to vector<16x1xi32>
    %10 = arith.addi %9, %8 : vector<16x1xi32>
    %c16_i32_4 = arith.constant 16 : i32
    %11 = vector.broadcast %c16_i32_4 : i32 to vector<16x1xi32>
    %12 = arith.cmpi slt, %10, %11 : vector<16x1xi32>
    %13 = arith.extui %12 : vector<16x1xi1> to vector<16x1xi32>
    %14 = arith.sitofp %13 : vector<16x1xi32> to vector<16x1xf32>
    %cst = arith.constant 0.000000e+00 : f32
    %15 = vector.shape_cast %12 : vector<16x1xi1> to vector<16x1xi1>
    %16 = vector.broadcast %15 : vector<16x1xi1> to vector<16x256xi1>
    %17 = vector.broadcast %cst : f32 to vector<16x256xf32>
    %18 = arith.select %16, %3, %17 : vector<16x256xi1>, vector<16x256xf32>
    %c0_i32_5 = arith.constant 0 : i32
    %19 = vector.broadcast %c0_i32_5 : i32 to vector<16x1xi32>
    %20 = arith.select %12, %4, %19 : vector<16x1xi1>, vector<16x1xi32>
    %21 = tpu.iota {dimensions = array<i32: 1>} : vector<16x256xi32>
    %22 = vector.broadcast %20 : vector<16x1xi32> to vector<16x256xi32>
    %23 = arith.cmpi eq, %21, %22 : vector<16x256xi32>
    %cst_6 = arith.constant dense<0xFF800000> : vector<16xf32>
    %24 = vector.multi_reduction <maximumf>, %18, %cst_6 [1] : vector<16x256xf32> to vector<16xf32>
    %25 = vector.shape_cast %24 : vector<16xf32> to vector<16x1xf32>
    %26 = vector.broadcast %25 : vector<16x1xf32> to vector<16x256xf32>
    %27 = arith.subf %18, %26 : vector<16x256xf32>
    %28 = math.exp %27 : vector<16x256xf32>
    %cst_7 = arith.constant dense<0.000000e+00> : vector<16xf32>
    %29 = vector.multi_reduction <add>, %28, %cst_7 [1] : vector<16x256xf32> to vector<16xf32>
    %30 = vector.shape_cast %29 : vector<16xf32> to vector<16x1xf32>
    %31 = math.log %30 : vector<16x1xf32>
    %32 = tpu.reciprocal %30 {approx = true} : vector<16x1xf32> -> vector<16x1xf32>
    %cst_8 = arith.constant 0.000000e+00 : f32
    %33 = vector.broadcast %cst_8 : f32 to vector<16x256xf32>
    %34 = arith.select %23, %27, %33 : vector<16x256xi1>, vector<16x256xf32>
    %cst_9 = arith.constant dense<0.000000e+00> : vector<16xf32>
    %35 = vector.multi_reduction <add>, %34, %cst_9 [1] : vector<16x256xf32> to vector<16xf32>
    %36 = vector.shape_cast %35 : vector<16xf32> to vector<16x1xf32>
    %37 = math.exp %36 : vector<16x1xf32>
    %38 = arith.subf %31, %36 : vector<16x1xf32>
    %39 = arith.mulf %38, %14 : vector<16x1xf32>
    %40 = arith.mulf %37, %32 : vector<16x1xf32>
    %cst_10 = arith.constant 1.000000e+00 : f32
    %41 = vector.broadcast %cst_10 : f32 to vector<16x1xf32>
    %42 = arith.subf %41, %40 : vector<16x1xf32>
    %43 = arith.mulf %42, %14 : vector<16x1xf32>
    %44 = vector.broadcast %25 : vector<16x1xf32> to vector<16x256xf32>
    %45 = arith.cmpf oeq, %18, %44 : vector<16x256xf32>
    %c256_i32 = arith.constant 256 : i32
    %46 = vector.broadcast %c256_i32 : i32 to vector<16x256xi32>
    %47 = arith.select %45, %21, %46 : vector<16x256xi1>, vector<16x256xi32>
    %cst_11 = arith.constant dense<2147483647> : vector<16xi32>
    %48 = vector.multi_reduction <minsi>, %47, %cst_11 [1] : vector<16x256xi32> to vector<16xi32>
    %49 = vector.shape_cast %48 : vector<16xi32> to vector<16x1xi32>
    %50 = vector.broadcast %49 : vector<16x1xi32> to vector<16x256xi32>
    %51 = arith.cmpi eq, %21, %50 : vector<16x256xi32>
    %c0_i32_12 = arith.constant 0 : i32
    %52 = vector.broadcast %c0_i32_12 : i32 to vector<16x1xi32>
    %53 = arith.cmpi ne, %20, %52 : vector<16x1xi32>
    %54 = arith.andi %53, %12 : vector<16x1xi1>
    %55 = arith.extui %51 : vector<16x256xi1> to vector<16x256xi32>
    %56 = arith.sitofp %55 : vector<16x256xi32> to vector<16x256xf32>
    %57 = arith.truncf %56 : vector<16x256xf32> to vector<16x256xbf16>
    %58 = arith.extui %23 : vector<16x256xi1> to vector<16x256xi32>
    %59 = arith.sitofp %58 : vector<16x256xi32> to vector<16x256xf32>
    %60 = arith.truncf %59 : vector<16x256xf32> to vector<16x256xbf16>
    %61 = arith.subf %57, %60 : vector<16x256xbf16>
    %62 = arith.extui %54 : vector<16x1xi1> to vector<16x1xi32>
    %63 = arith.sitofp %62 : vector<16x1xi32> to vector<16x1xf32>
    %64 = arith.truncf %63 : vector<16x1xf32> to vector<16x1xbf16>
    %65 = vector.broadcast %64 : vector<16x1xbf16> to vector<16x256xbf16>
    %66 = arith.mulf %61, %65 : vector<16x256xbf16>
    %c0_13 = arith.constant 0 : index
    %c0_14 = arith.constant 0 : index
    %67 = vector.load %arg6[%c0_13, %c0_14] : memref<256x128xbf16, #tpu.memory_space<vmem>>, vector<256x128xbf16>
    %cst_15 = arith.constant dense<0.000000e+00> : vector<16x128xf32>
    %68 = tpu.matmul %66, %67, %cst_15 {dimension_numbers = #tpu.dot_dimension_numbers<[1], [0], [0], [1], [0, 0, 1, 1], [], []>} : vector<16x256xbf16>, vector<256x128xbf16>, vector<16x128xf32> -> vector<16x128xf32>
    %69 = arith.mulf %68, %68 : vector<16x128xf32>
    %cst_16 = arith.constant dense<0.000000e+00> : vector<16xf32>
    %70 = vector.multi_reduction <add>, %69, %cst_16 [1] : vector<16x128xf32> to vector<16xf32>
    %71 = vector.shape_cast %70 : vector<16xf32> to vector<16x1xf32>
    %72 = tpu.iota {dimensions = array<i32: 1>} : vector<16x128xi32>
    %c0_i32_17 = arith.constant 0 : i32
    %73 = vector.broadcast %c0_i32_17 : i32 to vector<16x128xi32>
    %74 = arith.cmpi eq, %72, %73 : vector<16x128xi32>
    %c1_i32_18 = arith.constant 1 : i32
    %75 = vector.broadcast %c1_i32_18 : i32 to vector<16x128xi32>
    %76 = arith.cmpi eq, %72, %75 : vector<16x128xi32>
    %c2_i32 = arith.constant 2 : i32
    %77 = vector.broadcast %c2_i32 : i32 to vector<16x128xi32>
    %78 = arith.cmpi eq, %72, %77 : vector<16x128xi32>
    %cst_19 = arith.constant 0.000000e+00 : f32
    %79 = vector.shape_cast %43 : vector<16x1xf32> to vector<16x1xf32>
    %80 = vector.broadcast %79 : vector<16x1xf32> to vector<16x128xf32>
    %81 = vector.broadcast %cst_19 : f32 to vector<16x128xf32>
    %82 = arith.select %78, %80, %81 : vector<16x128xi1>, vector<16x128xf32>
    %83 = vector.shape_cast %71 : vector<16x1xf32> to vector<16x1xf32>
    %84 = vector.broadcast %83 : vector<16x1xf32> to vector<16x128xf32>
    %85 = arith.select %76, %84, %82 : vector<16x128xi1>, vector<16x128xf32>
    %86 = vector.shape_cast %39 : vector<16x1xf32> to vector<16x1xf32>
    %87 = vector.broadcast %86 : vector<16x1xf32> to vector<16x128xf32>
    %88 = arith.select %74, %87, %85 : vector<16x128xi1>, vector<16x128xf32>
    %c0_20 = arith.constant 0 : index
    %c0_21 = arith.constant 0 : index
    %89 = vector.load %arg7[%c0_20, %c0_21] : memref<16x128xf32, #tpu.memory_space<vmem>>, vector<16x128xf32>
    %90 = arith.addf %89, %88 : vector<16x128xf32>
    %c0_22 = arith.constant 0 : index
    %c0_23 = arith.constant 0 : index
    %91 = vector.load %arg7[%c0_22, %c0_23] : memref<16x128xf32, #tpu.memory_space<vmem>>, vector<16x128xf32>
    tpu.vector_store %arg7[%c0_22, %c0_23], %90 {strides = array<i32>} : memref<16x128xf32, #tpu.memory_space<vmem>>, vector<16x128xf32>,
    %c0_i32_24 = arith.constant 0 : i32
    %92 = arith.cmpi eq, %arg1, %c0_i32_24 : i32
    %93 = arith.extui %92 : i1 to i32
    %c0_i32_25 = arith.constant 0 : i32
    %94 = arith.cmpi ne, %93, %c0_i32_25 : i32
    scf.if %94 {
      %c0_26 = arith.constant 0 : index
      %c0_27 = arith.constant 0 : index
      %95 = vector.load %arg7[%c0_26, %c0_27] : memref<16x128xf32, #tpu.memory_space<vmem>>, vector<16x128xf32>
      %cst_28 = arith.constant dense<0.000000e+00> : vector<128xf32>
      %96 = vector.multi_reduction <add>, %95, %cst_28 [0] : vector<16x128xf32> to vector<128xf32>
      %97 = vector.shape_cast %96 : vector<128xf32> to vector<1x128xf32>
      %98 = vector.shape_cast %97 : vector<1x128xf32> to vector<1x1x128xf32>
      %c0_29 = arith.constant 0 : index
      %c0_30 = arith.constant 0 : index
      %c0_31 = arith.constant 0 : index
      %99 = vector.load %arg5[%c0_29, %c0_30, %c0_31] : memref<1x1x128xf32, #tpu.memory_space<vmem>>, vector<1x1x128xf32>
      tpu.vector_store %arg5[%c0_29, %c0_30, %c0_31], %98 {strides = array<i32>} : memref<1x1x128xf32, #tpu.memory_space<vmem>>, vector<1x1x128xf32>,
    } else {
    }
    return
  }
  func.func @transform_0(%arg0: i32, %arg1: i32) -> (i32, i32) {
    %c1_i32 = arith.constant 1 : i32
    %0 = arith.muli %arg0, %c1_i32 : i32
    %1 = arith.addi %0, %arg1 : i32
    %c0_i32 = arith.constant 0 : i32
    %2 = arith.minsi %1, %c0_i32 : i32
    %c0_i32_0 = arith.constant 0 : i32
    %c0_i32_1 = arith.constant 0 : i32
    return %2, %c0_i32_0 : i32, i32
  }
  func.func @transform_1(%arg0: i32, %arg1: i32) -> (i32, i32) {
    %c1_i32 = arith.constant 1 : i32
    %0 = arith.muli %arg0, %c1_i32 : i32
    %1 = arith.addi %0, %arg1 : i32
    %c0_i32 = arith.constant 0 : i32
    %2 = arith.minsi %1, %c0_i32 : i32
    %c0_i32_0 = arith.constant 0 : i32
    %c0_i32_1 = arith.constant 0 : i32
    return %2, %c0_i32_0 : i32, i32
  }
  func.func @transform_3(%arg0: i32, %arg1: i32) -> (i32, i32, i32) {
    %c0_i32 = arith.constant 0 : i32
    %c0_i32_0 = arith.constant 0 : i32
    %c0_i32_1 = arith.constant 0 : i32
    return %arg0, %c0_i32, %c0_i32_0 : i32, i32, i32
  }
}

</mosaic_0001>

<llo_original>
// kernel: run.1
$region0: #{run.1}
  #allocation0 [shape = 'u32[]', space=smem, size = 0x4, offset = 0x4, fixed_abs, tag = 'smem constant byte address 0x4 - core index']
  #allocation1 [shape = 'u32[144,128]{1,0:T(1,128)}', space=vmem, size = 0x12000, scoped, tag = 'internal scratch']
  #allocation2 [shape = 'bf16[256,128]{1,0:T(8,128)(2,1)}', space=vmem, size = 0x10000, scoped, tag = 'scratch operand']
  #allocation3 [shape = 'f32[16,128]{1,0:T(8,128)}', space=vmem, size = 0x2000, scoped, tag = 'scratch operand']
  #allocation4 [shape = 's32[1]{0}', space=sflag, size = 0x4, scoped, tag = 'scratch operand']
  #allocation5 [shape = 's32[]', space=sflag, size = 0x4, offset = 0, fixed_abs, tag = 'sflag constant byte address 0x0 - dummy sync flag']
  %s0 = inlined_call_operand.vmem [shape: f32[16,256], index: 0, kind: input, shape index: {}]
  %s1 = inlined_call_operand.vmem [shape: s32[16,1], index: 1, kind: input, shape index: {}]
  %s2 = inlined_call_operand.vmem [shape: bf16[256,128], index: 2, kind: input, shape index: {}]
  %s3 = inlined_call_operand.vmem [shape: f32[1,1,128], index: 3, kind: output, shape index: {}]
  %s4 = sld [smem:[#allocation0]]
  $region60: #{run.1} parent=0
    _
  %s6 = ssub.s32 1, %s4
  %s7 = scalar_select 0, %s6, %s4
  // Predicated region
  $region2: #{run.1} parent=0 // pred_check
    _
  $region3: #{run.1} parent=0 // pred_check_branch
    %9 = sbr.rel (0) target = $region5
  $region4: #{run.1} parent=0 // pred_region
    %s10 = sadd.s32 0, 0
    %p11 = scmp.lt.s32.totalorder %s10, 0
    %s12 = scalar_select %p11, %s10, 0
    %s13 = smul.u32 2, %s12
    %p14 = scmp.lt.s32.totalorder %s13, 1
    %s15 = scalar_select %p14, %s13, 1
    %s16 = smul.addr %s15, 2
    %s17 = smul.addr %s16, 8
    %s18 = scalar_lea.vmem %s0, %s17
    %s19 = sadd.s32 0, 0
    %p20 = scmp.lt.s32.totalorder %s19, 0
    %s21 = scalar_select %p20, %s19, 0
    %s22 = smul.u32 2, %s21
  $region5: #{run.1} parent=0 // pred_fallthru
    _
  // Predicated region
  $region6: #{run.1} parent=0 // pred_check
    _
  $region7: #{run.1} parent=0 // pred_check_branch
    %24 = sbr.rel (0) target = $region9
  $region8: #{run.1} parent=0 // pred_region
    %s25 = sadd.s32 0, 0
    %p26 = scmp.lt.s32.totalorder %s25, 0
    %s27 = scalar_select %p26, %s25, 0
    %s28 = smul.u32 2, %s27
    %p29 = scmp.lt.s32.totalorder %s28, 1
    %s30 = scalar_select %p29, %s28, 1
    %s31 = smul.addr %s30, 8
    %s32 = scalar_lea.vmem %s1, %s31
    %s33 = sadd.s32 0, 0
    %p34 = scmp.lt.s32.totalorder %s33, 0
    %s35 = scalar_select %p34, %s33, 0
    %s36 = smul.u32 2, %s35
  $region9: #{run.1} parent=0 // pred_fallthru
    _
  %s37 = sadd.s32 0, 0
  %p38 = scmp.lt.s32.totalorder %s37, 0
  %s39 = scalar_select %p38, %s37, 0
  %s40 = smul.u32 2, %s39
  %p41 = scmp.lt.s32.totalorder %s40, 1
  %s42 = scalar_select %p41, %s40, 1
  %s43 = smul.addr %s42, 2
  %s44 = smul.addr %s43, 8
  %s45 = scalar_lea.vmem %s0, %s44
  %s46 = sadd.s32 0, 0
  %p47 = scmp.lt.s32.totalorder %s46, 0
  %s48 = scalar_select %p47, %s46, 0
  %s49 = smul.u32 2, %s48
  %p50 = scmp.lt.s32.totalorder %s49, 1
  %s51 = scalar_select %p50, %s49, 1
  %s52 = smul.addr %s51, 8
  %s53 = scalar_lea.vmem %s1, %s52
  %s54 = sadd.s32 0, 0
  %p55 = scmp.lt.s32.totalorder %s54, 0
  %s56 = scalar_select %p55, %s54, 0
  %s57 = smul.u32 2, %s56
  %p58 = scmp.lt.s32.totalorder %s57, 1
  %s59 = scalar_select %p58, %s57, 1
  %s60 = smul.addr %s59, 2
  %s61 = smul.addr %s60, 8
  %s62 = scalar_lea.vmem %s0, %s61
  %s63 = sadd.s32 0, 0
  %p64 = scmp.lt.s32.totalorder %s63, 0
  %s65 = scalar_select %p64, %s63, 0
  %s66 = smul.u32 2, %s65
  %s67 = sadd.s32 0, 0
  %p68 = scmp.lt.s32.totalorder %s67, 0
  %s69 = scalar_select %p68, %s67, 0
  %s70 = smul.u32 2, %s69
  %p71 = scmp.lt.s32.totalorder %s70, 1
  %s72 = scalar_select %p71, %s70, 1
  %s73 = smul.addr %s72, 8
  %s74 = scalar_lea.vmem %s1, %s73
  %s75 = sadd.s32 0, 0
  %p76 = scmp.lt.s32.totalorder %s75, 0
  %s77 = scalar_select %p76, %s75, 0
  %s78 = smul.u32 2, %s77
  %p80 = scmp.eq.s32.totalorder 0, 0
  // Predicated region
  $region10: #{run.1} parent=0 // pred_check
    %p81 = pneg %p80
  $region11: #{run.1} parent=0 // pred_check_branch
    %83 = sbr.rel (%p81) target = $region13
  $region12: #{run.1} parent=0 // pred_region
    %p85 = scmp.lt.u32.totalorder 128, 8
    %p86 = pneg %p85
    // Predicated region
    $region14: #{run.1} parent=12 // pred_check
      _
    $region15: #{run.1} parent=12 // pred_check_branch
      %88 = sbr.rel (%p85) target = $region17
    $region16: #{run.1} parent=12 // pred_region
      %s104 = sand.u32 128, 7
      %p105 = scmp.eq.s32.totalorder %s104, 0
      // Predicated region
      $region29: #{run.1} parent=16 // pred_check
        %p106 = pneg %p105
      $region30: #{run.1} parent=16 // pred_check_branch
        %108 = sbr.rel (%p106) target = $region32
      $region31: #{run.1} parent=16 // pred_region
        loop: start=0, step=1, limit=1
        $region33: #{run.1} parent=31 // loop_pre_header
          _
        $region34: #{run.1} parent=31 // loop_header
          %s110 = sphi 0, %s114
          %p111 = scmp.ge.s32.totalorder %s110, 1
          %s115 = sphi %s2, %s2
          %s116 = sphi [#allocation2], [#allocation2]
        $region35: #{run.1} parent=31 // loop_header_branch
          %113 = sbr.rel (%p111) target = $region39
        $region36: #{run.1} parent=31 // loop_body
          %v117 = vld [vmem:[%s115] sm:$0xff]
          %118 = vst [vmem:[%s116] sm:$0xff] %v117
          %v119 = vld [vmem:[%s115 + $0x8] sm:$0xff]
          %120 = vst [vmem:[%s116 + $0x8] sm:$0xff] %v119
          %v121 = vld [vmem:[%s115 + $0x10] sm:$0xff]
          %122 = vst [vmem:[%s116 + $0x10] sm:$0xff] %v121
          %v123 = vld [vmem:[%s115 + $0x18] sm:$0xff]
          %124 = vst [vmem:[%s116 + $0x18] sm:$0xff] %v123
          %v125 = vld [vmem:[%s115 + $0x20] sm:$0xff]
          %126 = vst [vmem:[%s116 + $0x20] sm:$0xff] %v125
          %v127 = vld [vmem:[%s115 + $0x28] sm:$0xff]
          %128 = vst [vmem:[%s116 + $0x28] sm:$0xff] %v127
          %v129 = vld [vmem:[%s115 + $0x30] sm:$0xff]
          %130 = vst [vmem:[%s116 + $0x30] sm:$0xff] %v129
          %v131 = vld [vmem:[%s115 + $0x38] sm:$0xff]
          %132 = vst [vmem:[%s116 + $0x38] sm:$0xff] %v131
          %v133 = vld [vmem:[%s115 + $0x40] sm:$0xff]
          %134 = vst [vmem:[%s116 + $0x40] sm:$0xff] %v133
          %v135 = vld [vmem:[%s115 + $0x48] sm:$0xff]
          %136 = vst [vmem:[%s116 + $0x48] sm:$0xff] %v135
          %v137 = vld [vmem:[%s115 + $0x50] sm:$0xff]
          %138 = vst [vmem:[%s116 + $0x50] sm:$0xff] %v137
          %v139 = vld [vmem:[%s115 + $0x58] sm:$0xff]
          %140 = vst [vmem:[%s116 + $0x58] sm:$0xff] %v139
          %v141 = vld [vmem:[%s115 + $0x60] sm:$0xff]
          %142 = vst [vmem:[%s116 + $0x60] sm:$0xff] %v141
          %v143 = vld [vmem:[%s115 + $0x68] sm:$0xff]
          %144 = vst [vmem:[%s116 + $0x68] sm:$0xff] %v143
          %v145 = vld [vmem:[%s115 + $0x70] sm:$0xff]
          %146 = vst [vmem:[%s116 + $0x70] sm:$0xff] %v145
          %v147 = vld [vmem:[%s115 + $0x78] sm:$0xff]
          %148 = vst [vmem:[%s116 + $0x78] sm:$0xff] %v147
        $region37: #{run.1} parent=31 // loop_footer
          %s114 = sadd.s32 1, %s110
        $region38: #{run.1} parent=31 // loop_footer_branch
          %109 = sbr.rel target = $region34
        $region39: #{run.1} parent=31 // loop_exit
          _
      $region32: #{run.1} parent=16 // pred_fallthru
        _
      %p149 = pneg %p105
      // Predicated region
      $region40: #{run.1} parent=16 // pred_check
        _
      $region41: #{run.1} parent=16 // pred_check_branch
        %151 = sbr.rel (%p105) target = $region43
      $region42: #{run.1} parent=16 // pred_region
        %s152 = sand.u32 128, 7
      $region43: #{run.1} parent=16 // pred_fallthru
        _
    $region17: #{run.1} parent=12 // pred_fallthru
      _
    // Predicated region
    $region18: #{run.1} parent=12 // pred_check
      %p89 = pneg %p85
    $region19: #{run.1} parent=12 // pred_check_branch
      %91 = sbr.rel (%p89) target = $region21
    $region20: #{run.1} parent=12 // pred_region
      %s92 = sshll.u32 1, 128
      %s93 = ssub.s32 %s92, 1
      loop: start=0, step=1, limit=1
      $region22: #{run.1} parent=20 // loop_pre_header
        _
      $region23: #{run.1} parent=20 // loop_header
        %s95 = sphi 0, %s99
        %p96 = scmp.ge.s32.totalorder %s95, 1
        %s100 = sphi %s2, %s2
        %s101 = sphi [#allocation2], [#allocation2]
      $region24: #{run.1} parent=20 // loop_header_branch
        %98 = sbr.rel (%p96) target = $region28
      $region25: #{run.1} parent=20 // loop_body
        %v102 = vld [vmem:[%s100] sm:%s93]
        %103 = vst [vmem:[%s101] sm:%s93] %v102
      $region26: #{run.1} parent=20 // loop_footer
        %s99 = sadd.s32 1, %s95
      $region27: #{run.1} parent=20 // loop_footer_branch
        %94 = sbr.rel target = $region23
      $region28: #{run.1} parent=20 // loop_exit
        _
    $region21: #{run.1} parent=12 // pred_fallthru
      _
    // Predicated region
    $region44: #{run.1} parent=12 // pred_check
      _
    $region45: #{run.1} parent=12 // pred_check_branch
      %155 = sbr.rel (0) target = $region47
    $region46: #{run.1} parent=12 // pred_region
      %156 = vsyncadd [#allocation4], 2048
    $region47: #{run.1} parent=12 // pred_fallthru
      _
    %s157 = smul.u32 4, 32
    %s158 = smul.u32 %s157, 1
    %s159 = sshll.u32 %s158, 4
    %160 = dma.done [#allocation4], %s159
    %161 = vst [vmem:[#allocation3] sm:$0xff] 0.0
    %162 = vst [vmem:[#allocation3 + $0x8] sm:$0xff] 0.0
  $region13: #{run.1} parent=0 // pred_fallthru
    _
  %v163 = vld [vmem:[%s62] sm:$0xff]
  %v164 = vld [vmem:[%s62 + $0x8] sm:$0xff]
  %v165 = vld [vmem:[%s62 + $0x10] sm:$0xff]
  %v166 = vld [vmem:[%s62 + $0x18] sm:$0xff]
  %v167 = vld [vmem:[%s74] sm:$0xff]
  %v168 = vld [vmem:[%s74 + $0x8] sm:$0xff]
  %s169 = sadd.s32 0, 0
  %s170 = smul.u32 %s169, 16
  %v171 = vlaneseq
  %v172 = vshrl.u32 %v171, 7
  %v173 = vadd.s32 %v172, 8
  %v174 = vstv %s170
  %v175 = vadd.s32 %v174, %v172
  %v176 = vadd.s32 %v174, %v173
  %vm177 = vcmp.lt.s32.totalorder %v175, 16
  %vm178 = vcmp.lt.s32.totalorder %v176, 16
  %v179 = vsel %vm177, 1, 0
  %v180 = vsel %vm178, 1, 0
  %v181 = vcvt.s32.f32 %v179
  %v182 = vcvt.s32.f32 %v180
  %vm183 = vcmp.eq.s32.totalorder %v179, 1
  %vm184 = vcmp.eq.s32.totalorder %v180, 1
  %v185 = vsel %vm183, %v163, 0.0
  %v186 = vsel %vm183, %v164, 0.0
  %v187 = vsel %vm184, %v165, 0.0
  %v188 = vsel %vm184, %v166, 0.0
  %v189 = vsel %vm177, %v167, 0
  %v190 = vsel %vm178, %v168, 0
  %v191 = vlaneseq
  %v192 = vand.u32 %v191, 127
  %v193 = vadd.s32 %v192, 128
  %194 = vset.pattern.permute.xlu0 0
  %195 = vperm.xlu0 %194, %v189
  %v196 = vpop.permute.xlu0 %195
  %197 = vset.pattern.permute.xlu0 0
  %198 = vperm.xlu0 %197, %v190
  %v199 = vpop.permute.xlu0 %198
  %vm200 = vcmp.eq.s32.totalorder %v192, %v196
  %vm201 = vcmp.eq.s32.totalorder %v193, %v196
  %vm202 = vcmp.eq.s32.totalorder %v192, %v199
  %vm203 = vcmp.eq.s32.totalorder %v193, %v199
  %v204 = vmax.f32 %v185, %v186
  %205 = vmax.xlane.f32.xlu0 %v204
  %v206 = vpop.xlane.xlu0 %205
  %v207 = vmax.f32 %v187, %v188
  %208 = vmax.xlane.f32.xlu0 %v207
  %v209 = vpop.xlane.xlu0 %208
  %v210 = vsub.f32 %v185, %v206
  %v211 = vsub.f32 %v186, %v206
  %v212 = vsub.f32 %v187, %v209
  %v213 = vsub.f32 %v188, %v209
  %v214 = vmul.f32 %v210, 1.442695
  %v215 = vpow.pop %v214
  %v216 = vmul.f32 %v211, 1.442695
  %v217 = vpow.pop %v216
  %v218 = vmul.f32 %v212, 1.442695
  %v219 = vpow.pop %v218
  %v220 = vmul.f32 %v213, 1.442695
  %v221 = vpow.pop %v220
  %v222 = vadd.f32 %v215, %v217
  %223 = vadd.xlane.f32.xlu0 %v222
  %v224 = vpop.xlane.xlu0 %223
  %v225 = vadd.f32 %v219, %v221
  %226 = vadd.xlane.f32.xlu0 %v225
  %v227 = vpop.xlane.xlu0 %226
  %v228 = vlog2.pop %v224
  %v229 = vmul.f32 %v228, 0.6931472
  %v230 = vlog2.pop %v227
  %v231 = vmul.f32 %v230, 0.6931472
  %v232 = vrcp.pop %v224
  %v233 = vrcp.pop %v227
  %v234 = vsel %vm200, %v210, 0.0
  %v235 = vsel %vm201, %v211, 0.0
  %v236 = vsel %vm202, %v212, 0.0
  %v237 = vsel %vm203, %v213, 0.0
  %v238 = vadd.f32 %v234, %v235
  %239 = vadd.xlane.f32.xlu0 %v238
  %v240 = vpop.xlane.xlu0 %239
  %v241 = vadd.f32 %v236, %v237
  %242 = vadd.xlane.f32.xlu0 %v241
  %v243 = vpop.xlane.xlu0 %242
  %v244 = vmul.f32 %v240, 1.442695
  %v245 = vpow.pop %v244
  %v246 = vmul.f32 %v243, 1.442695
  %v247 = vpow.pop %v246
  %v248 = vsub.f32 %v229, %v240
  %v249 = vsub.f32 %v231, %v243
  %v250 = vmul.f32 %v248, %v181
  %v251 = vmul.f32 %v249, %v182
  %v252 = vmul.f32 %v245, %v232
  %v253 = vmul.f32 %v247, %v233
  %v254 = vsub.f32 1.0, %v252
  %v255 = vsub.f32 1.0, %v253
  %v256 = vmul.f32 %v254, %v181
  %v257 = vmul.f32 %v255, %v182
  %vm258 = vcmp.eq.f32.partialorder %v185, %v206
  %vm259 = vcmp.eq.f32.partialorder %v186, %v206
  %vm260 = vcmp.eq.f32.partialorder %v187, %v209
  %vm261 = vcmp.eq.f32.partialorder %v188, %v209
  %v262 = vsel %vm258, %v192, 256
  %v263 = vsel %vm259, %v193, 256
  %v264 = vsel %vm260, %v192, 256
  %v265 = vsel %vm261, %v193, 256
  %vm266 = vcmp.lt.s32.totalorder %v262, %v263
  %v267 = vsel %vm266, %v262, %v263
  %v268 = vand.u32 %v267, 65535
  %v269 = vshra.s32 %v267, 16
  %v270 = vcvt.s32.f32 %v268
  %v271 = vcvt.s32.f32 %v269
  %272 = vmin.xlane.f32.xlu0 %v271
  %v273 = vpop.xlane.xlu0 %272
  %vm274 = vcmp.eq.f32.partialorder %v271, %v273
  %v275 = vsel %vm274, %v270, inf
  %276 = vmin.xlane.f32.xlu0 %v275
  %v277 = vpop.xlane.xlu0 %276
  %v278 = vcvt.f32.s32 %v277
  %v279 = vcvt.f32.s32 %v273
  %v280 = vshll.u32 %v279, 16
  %v281 = vadd.s32 %v280, %v278
  %vm282 = vcmp.lt.s32.totalorder %v264, %v265
  %v283 = vsel %vm282, %v264, %v265
  %v284 = vand.u32 %v283, 65535
  %v285 = vshra.s32 %v283, 16
  %v286 = vcvt.s32.f32 %v284
  %v287 = vcvt.s32.f32 %v285
  %288 = vmin.xlane.f32.xlu0 %v287
  %v289 = vpop.xlane.xlu0 %288
  %vm290 = vcmp.eq.f32.partialorder %v287, %v289
  %v291 = vsel %vm290, %v286, inf
  %292 = vmin.xlane.f32.xlu0 %v291
  %v293 = vpop.xlane.xlu0 %292
  %v294 = vcvt.f32.s32 %v293
  %v295 = vcvt.f32.s32 %v289
  %v296 = vshll.u32 %v295, 16
  %v297 = vadd.s32 %v296, %v294
  %vm298 = vcmp.eq.s32.totalorder %v192, %v281
  %vm299 = vcmp.eq.s32.totalorder %v193, %v281
  %vm300 = vcmp.eq.s32.totalorder %v192, %v297
  %vm301 = vcmp.eq.s32.totalorder %v193, %v297
  %vm302 = vcmp.ne.s32.totalorder %v189, 0
  %vm303 = vcmp.ne.s32.totalorder %v190, 0
  %vm304 = vmand %vm302, %vm177
  %vm305 = vmand %vm303, %vm178
  %v306 = vsel %vm298, 1, 0
  %v307 = vsel %vm299, 1, 0
  %v308 = vsel %vm300, 1, 0
  %v309 = vsel %vm301, 1, 0
  %v310 = vcvt.s32.f32 %v306
  %v311 = vcvt.s32.f32 %v307
  %v312 = vcvt.s32.f32 %v308
  %v313 = vcvt.s32.f32 %v309
  %v314 = vpack.c.bf16 %v312, %v310
  %v315 = vpack.c.bf16 %v313, %v311
  %v316 = vsel %vm200, 1, 0
  %v317 = vsel %vm201, 1, 0
  %v318 = vsel %vm202, 1, 0
  %v319 = vsel %vm203, 1, 0
  %v320 = vcvt.s32.f32 %v316
  %v321 = vcvt.s32.f32 %v317
  %v322 = vcvt.s32.f32 %v318
  %v323 = vcvt.s32.f32 %v319
  %v324 = vpack.c.bf16 %v322, %v320
  %v325 = vpack.c.bf16 %v323, %v321
  %v326 = vsub.bf16 %v314, %v324
  %v327 = vsub.bf16 %v315, %v325
  %v328 = vsel %vm304, 1, 0
  %v329 = vsel %vm305, 1, 0
  %v330 = vcvt.s32.f32 %v328
  %v331 = vcvt.s32.f32 %v329
  %v332 = vpack.c.bf16 %v331, %v330
  %334 = vset.pattern.permute.xlu0 0
  %335 = vperm.xlu0 %334, %v332
  %v336 = vpop.permute.xlu0 %335
  %v338 = vmul.bf16 %v326, %v336
  %v339 = vmul.bf16 %v327, %v336
  %v340 = vld [vmem:[#allocation2] sm:$0xf]
  %v341 = vld [vmem:[#allocation2 + $0x4] sm:$0xf]
  %v342 = vld [vmem:[#allocation2 + $0x8] sm:$0xf]
  %v343 = vld [vmem:[#allocation2 + $0xc] sm:$0xf]
  %v344 = vld [vmem:[#allocation2 + $0x10] sm:$0xf]
  %v345 = vld [vmem:[#allocation2 + $0x14] sm:$0xf]
  %v346 = vld [vmem:[#allocation2 + $0x18] sm:$0xf]
  %v347 = vld [vmem:[#allocation2 + $0x1c] sm:$0xf]
  %v348 = vld [vmem:[#allocation2 + $0x20] sm:$0xf]
  %v349 = vld [vmem:[#allocation2 + $0x24] sm:$0xf]
  %v350 = vld [vmem:[#allocation2 + $0x28] sm:$0xf]
  %v351 = vld [vmem:[#allocation2 + $0x2c] sm:$0xf]
  %v352 = vld [vmem:[#allocation2 + $0x30] sm:$0xf]
  %v353 = vld [vmem:[#allocation2 + $0x34] sm:$0xf]
  %v354 = vld [vmem:[#allocation2 + $0x38] sm:$0xf]
  %v355 = vld [vmem:[#allocation2 + $0x3c] sm:$0xf]
  %v356 = vld [vmem:[#allocation2 + $0x40] sm:$0xf]
  %v357 = vld [vmem:[#allocation2 + $0x44] sm:$0xf]
  %v358 = vld [vmem:[#allocation2 + $0x48] sm:$0xf]
  %v359 = vld [vmem:[#allocation2 + $0x4c] sm:$0xf]
  %v360 = vld [vmem:[#allocation2 + $0x50] sm:$0xf]
  %v361 = vld [vmem:[#allocation2 + $0x54] sm:$0xf]
  %v362 = vld [vmem:[#allocation2 + $0x58] sm:$0xf]
  %v363 = vld [vmem:[#allocation2 + $0x5c] sm:$0xf]
  %v364 = vld [vmem:[#allocation2 + $0x60] sm:$0xf]
  %v365 = vld [vmem:[#allocation2 + $0x64] sm:$0xf]
  %v366 = vld [vmem:[#allocation2 + $0x68] sm:$0xf]
  %v367 = vld [vmem:[#allocation2 + $0x6c] sm:$0xf]
  %v368 = vld [vmem:[#allocation2 + $0x70] sm:$0xf]
  %v369 = vld [vmem:[#allocation2 + $0x74] sm:$0xf]
  %v370 = vld [vmem:[#allocation2 + $0x78] sm:$0xf]
  %v371 = vld [vmem:[#allocation2 + $0x7c] sm:$0xf]
  %v404 = vunpack.c.l.b16 %v340
  %v405 = vunpack.c.l.b16 %v341
  %v406 = vunpack.c.l.b16 %v342
  %v407 = vunpack.c.l.b16 %v343
  %v408 = vunpack.c.l.b16 %v344
  %v409 = vunpack.c.l.b16 %v345
  %v410 = vunpack.c.l.b16 %v346
  %v411 = vunpack.c.l.b16 %v347
  %v412 = vunpack.c.l.b16 %v348
  %v413 = vunpack.c.l.b16 %v349
  %v414 = vunpack.c.l.b16 %v350
  %v415 = vunpack.c.l.b16 %v351
  %v416 = vunpack.c.l.b16 %v352
  %v417 = vunpack.c.l.b16 %v353
  %v418 = vunpack.c.l.b16 %v354
  %v419 = vunpack.c.l.b16 %v355
  %v420 = vunpack.c.l.b16 %v356
  %v421 = vunpack.c.l.b16 %v357
  %v422 = vunpack.c.l.b16 %v358
  %v423 = vunpack.c.l.b16 %v359
  %v424 = vunpack.c.l.b16 %v360
  %v425 = vunpack.c.l.b16 %v361
  %v426 = vunpack.c.l.b16 %v362
  %v427 = vunpack.c.l.b16 %v363
  %v428 = vunpack.c.l.b16 %v364
  %v429 = vunpack.c.l.b16 %v365
  %v430 = vunpack.c.l.b16 %v366
  %v431 = vunpack.c.l.b16 %v367
  %v432 = vunpack.c.l.b16 %v368
  %v433 = vunpack.c.l.b16 %v369
  %v434 = vunpack.c.l.b16 %v370
  %v435 = vunpack.c.l.b16 %v371
  %v436 = vpack.c.b16 %v405, %v404
  %v437 = vpack.c.b16 %v407, %v406
  %v438 = vpack.c.b16 %v409, %v408
  %v439 = vpack.c.b16 %v411, %v410
  %v440 = vpack.c.b16 %v413, %v412
  %v441 = vpack.c.b16 %v415, %v414
  %v442 = vpack.c.b16 %v417, %v416
  %v443 = vpack.c.b16 %v419, %v418
  %v444 = vpack.c.b16 %v421, %v420
  %v445 = vpack.c.b16 %v423, %v422
  %v446 = vpack.c.b16 %v425, %v424
  %v447 = vpack.c.b16 %v427, %v426
  %v448 = vpack.c.b16 %v429, %v428
  %v449 = vpack.c.b16 %v431, %v430
  %v450 = vpack.c.b16 %v433, %v432
  %v451 = vpack.c.b16 %v435, %v434
  %468 = vmatprep.subr.bf16.mxu0 0
  %469 = vmatpush1.bf16.msra.mxu0 %v443
  %470 = vmatprep.subr.bf16.mxu0 0
  %471 = vmatpush1.bf16.msra.mxu0 %v442
  %472 = vmatprep.subr.bf16.mxu0 0
  %473 = vmatpush1.bf16.msra.mxu0 %v441
  %474 = vmatprep.subr.bf16.mxu0 0
  %475 = vmatpush1.bf16.msra.mxu0 %v440
  %476 = vmatprep.subr.bf16.mxu0 0
  %477 = vmatpush1.bf16.msra.mxu0 %v439
  %478 = vmatprep.subr.bf16.mxu0 0
  %479 = vmatpush1.bf16.msra.mxu0 %v438
  %480 = vmatprep.subr.bf16.mxu0 0
  %481 = vmatpush1.bf16.msra.mxu0 %v437
  %482 = vmatprep.subr.bf16.mxu0 0
  %483 = vmatpush1.bf16.msra.mxu0 %v436
  %484 = vmatprep.subr.bf16.mxu0 0
  %485 = vmatpush2.bf16.msra.mxu0 %v451
  %486 = vmatprep.subr.bf16.mxu0 0
  %487 = vmatpush2.bf16.msra.mxu0 %v450
  %488 = vmatprep.subr.bf16.mxu0 0
  %489 = vmatpush2.bf16.msra.mxu0 %v449
  %490 = vmatprep.subr.bf16.mxu0 0
  %491 = vmatpush2.bf16.msra.mxu0 %v448
  %492 = vmatprep.subr.bf16.mxu0 0
  %493 = vmatpush2.bf16.msra.mxu0 %v447
  %494 = vmatprep.subr.bf16.mxu0 0
  %495 = vmatpush2.bf16.msra.mxu0 %v446
  %496 = vmatprep.subr.bf16.mxu0 0
  %497 = vmatpush2.bf16.msra.mxu0 %v445
  %498 = vmatprep.subr.bf16.mxu0 0
  %499 = vmatpush2.bf16.msra.mxu0 %v444
  %500 = vmatprep.mubr.bf16.mxu0 %v339
  %501 = vmatmul.mubr.bf16.gmra.mxu0 %v338
  %v502 = vpop.f32.mrf.mxu0
  %v503 = vadd.f32 0.0, %v502
  %v504 = vpop.f32.mrf.mxu0
  %v505 = vpop.f32.mrf.mxu0
  %v506 = vadd.f32 0.0, %v505
  %v507 = vpop.f32.mrf.mxu0
  %508 = vdwg.mxu0
  %v509 = vmul.f32 %v503, %v503
  %v510 = vmul.f32 %v506, %v506
  %511 = vadd.xlane.f32.xlu0 %v509
  %v512 = vpop.xlane.xlu0 %511
  %513 = vadd.xlane.f32.xlu0 %v510
  %v514 = vpop.xlane.xlu0 %513
  %vm515 = vcmp.eq.s32.totalorder %v192, 0
  %vm516 = vcmp.eq.s32.totalorder %v192, 1
  %vm517 = vcmp.eq.s32.totalorder %v192, 2
  %v518 = vsel %vm517, %v256, 0.0
  %v519 = vsel %vm517, %v257, 0.0
  %v520 = vsel %vm516, %v512, %v518
  %v521 = vsel %vm516, %v514, %v519
  %v522 = vsel %vm515, %v250, %v520
  %v523 = vsel %vm515, %v251, %v521
  %v524 = vld [vmem:[#allocation3] sm:$0xff]
  %v525 = vld [vmem:[#allocation3 + $0x8] sm:$0xff]
  %v526 = vadd.f32 %v524, %v522
  %v527 = vadd.f32 %v525, %v523
  %528 = vst [vmem:[#allocation3] sm:$0xff] %v526
  %529 = vst [vmem:[#allocation3 + $0x8] sm:$0xff] %v527
  // Predicated region
  $region48: #{run.1} parent=0 // pred_check
    %p530 = pneg %p80
  $region49: #{run.1} parent=0 // pred_check_branch
    %532 = sbr.rel (%p530) target = $region51
  $region50: #{run.1} parent=0 // pred_region
    %v533 = vld [vmem:[#allocation3] sm:$0xff]
    %v534 = vld [vmem:[#allocation3 + $0x8] sm:$0xff]
    %v535 = vadd.f32 %v533, %v534
    %v536 = vrot.slane %v535, 4
    %v537 = vadd.f32 %v535, %v536
    %v538 = vrot.slane %v537, 2
    %v539 = vadd.f32 %v537, %v538
    %v540 = vrot.slane %v539, 1
    %v541 = vadd.f32 %v539, %v540
    %542 = vst [vmem:[%s3] sm:$0x1] %v541
  $region51: #{run.1} parent=0 // pred_fallthru
    _
  // Predicated region
  $region52: #{run.1} parent=0 // pred_check
    _
  $region53: #{run.1} parent=0 // pred_check_branch
    %544 = sbr.rel (0) target = $region55
  $region54: #{run.1} parent=0 // pred_region
    _
  $region55: #{run.1} parent=0 // pred_fallthru
    _
  // Predicated region
  $region56: #{run.1} parent=0 // pred_check
    _
  $region57: #{run.1} parent=0 // pred_check_branch
    %546 = sbr.rel (0) target = $region59
  $region58: #{run.1} parent=0 // pred_region
    _
  $region59: #{run.1} parent=0 // pred_fallthru
    _
  %547 = vsyncmov [#allocation4]
  %s548 = vpop.sfrf %547
  %p549 = scmp.eq.s32.totalorder %s548, 0
  %p550 = pneg %p549
  %552 = shalt.err (%p550)

</llo_original>
